<compile_context>
chip_gen: v6e
topology: v6e:2x2x1
jax: 0.10.0
libtpu: 0.0.40
codegen_flags: <defaults>
</compile_context>

<pallas_src>
import jax
import jax.numpy as jnp
from jax.experimental import pallas as pl
from jax.experimental.pallas import tpu as pltpu


def _round_up(n: int, m: int) -> int:
    return ((n + m - 1) // m) * m


def hunter_mlp_kernel(x_ref, w1_ref, b1_ref, w2d_ref, b2d_ref, o_ref):
    # fc1 + ReLU on the MXU with f32 accumulation.  x/w1 may be bf16 or f32;
    # K=100 is left unpadded (Mosaic masks the contraction), N is lane-dense.
    h = jnp.dot(x_ref[...], w1_ref[...], preferred_element_type=jnp.float32)
    h = jnp.maximum(h + b1_ref[...], 0.0)

    # fc2 collapsed to the logit difference d = logit0 - logit1:
    # VPU broadcast-multiply + a single lane reduction instead of a
    # mostly-empty second MXU pass.  b2-diff comes in as an SMEM scalar.
    d = jnp.sum(h * w2d_ref[...], axis=1, keepdims=True) + b2d_ref[0, 0]

    # softmax over 2 classes == sigmoid(d); tanh form runs on the EUP and
    # avoids the exp pair, the 2-wide cross-lane reductions, and the divide.
    p0 = 0.5 * (1.0 + jnp.tanh(0.5 * d))                     # (tb, 1)

    # Single fused store of both probability columns.
    lane = jax.lax.broadcasted_iota(jnp.int32, (d.shape[0], 2), 1)
    o_ref[...] = jnp.where(lane == 0, p0, 1.0 - p0).astype(o_ref.dtype)


def hunter_agent_forward(x, w1, b1, w2, b2, *, block_b=None):
    """HunterAgentModel forward.

    x : (B, in) f32 or bf16 (bf16 halves streamed HBM bytes; f32 accumulation)
    w1: (in, hid)  pre-transposed nn.Linear weight (y = x @ w1 + b1)
    b1: (hid,)
    w2: (hid, 2)   pre-transposed
    b2: (2,)
    Returns (B, 2) f32 softmax probabilities.
    """
    B, in_dim = x.shape
    hid = w1.shape[1]
    assert w2.shape == (hid, 2) and b1.shape == (hid,) and b2.shape == (2,)

    hid_p = _round_up(hid, 128)            # 50 -> 128 (lane-dense MXU output)

    x_is_bf16 = x.dtype == jnp.bfloat16
    if block_b is None:
        block_b = 8192 if x_is_bf16 else 4096
    sub = 16 if x_is_bf16 else 8

    # Batch tile: sublane-aligned, capped by block_b, and sized so that large
    # batches always produce >= 2 grid tiles (v7x has 2 TensorCores).
    tb = min(block_b, _round_up(max(pl.cdiv(B, 2), sub), sub))
    grid_b = pl.cdiv(B, tb)                # last tile may be partial (masked)

    # Weights are tiny: zero-pad the hidden dim once; cast w1 to x's dtype so
    # a bf16 x gets a bf16 MXU pass.  Everything after the matmul stays f32.
    w1_p = jnp.pad(w1, ((0, 0), (0, hid_p - hid))).astype(x.dtype)
    b1_p = jnp.pad(b1, (0, hid_p - hid)).reshape(1, hid_p).astype(jnp.float32)
    w2d = jnp.pad(w2[:, 0] - w2[:, 1], (0, hid_p - hid)).reshape(1, hid_p)
    w2d = w2d.astype(jnp.float32)
    b2d = (b2[0] - b2[1]).reshape(1, 1).astype(jnp.float32)

    return pl.pallas_call(
        hunter_mlp_kernel,
        out_shape=jax.ShapeDtypeStruct((B, 2), jnp.float32),
        grid_spec=pltpu.PrefetchScalarGridSpec(
            num_scalar_prefetch=0,
            grid=(grid_b,),
            in_specs=[
                pl.BlockSpec((tb, in_dim), lambda i: (i, 0)),       # x: streamed
                pl.BlockSpec((in_dim, hid_p), lambda i: (0, 0)),    # w1: VMEM-resident
                pl.BlockSpec((1, hid_p), lambda i: (0, 0)),         # b1: VMEM-resident
                pl.BlockSpec((1, hid_p), lambda i: (0, 0)),         # w2 logit-diff vec
                pl.BlockSpec(memory_space=pltpu.MemorySpace.SMEM),  # b2 logit-diff scalar
            ],
            out_specs=pl.BlockSpec((tb, 2), lambda i: (i, 0)),
        ),
        compiler_params=pltpu.CompilerParams(
            dimension_semantics=("parallel",),   # v7x: shard batch tiles over both TCs
            vmem_limit_bytes=32 * 1024 * 1024,   # lift v5e's 16 MiB default scoped limit
        ),
    )(x, w1_p, b1_p, w2d, b2d)


def reference_forward(x, w1, b1, w2, b2):
    # fc1 via the same default matmul lowering the kernel's MXU dot uses;
    # fc2 at highest precision to mirror the kernel's exact VPU reduction.
    h = jnp.maximum(x @ w1 + b1, 0.0)
    logits = jnp.dot(h, w2, precision=jax.lax.Precision.HIGHEST) + b2
    return jax.nn.softmax(logits, axis=1)


if __name__ == "__main__":
    INPUT_SIZE, HIDDEN_SIZE, OUTPUT_SIZE = 100, 50, 2
    BATCH = 8

    key = jax.random.PRNGKey(0)
    kx, kw1, kb1, kw2, kb2 = jax.random.split(key, 5)

    # Deterministic parameter init (nn.Linear-style uniform bounds).
    bound1 = 1.0 / (INPUT_SIZE ** 0.5)
    bound2 = 1.0 / (HIDDEN_SIZE ** 0.5)
    w1 = jax.random.uniform(kw1, (INPUT_SIZE, HIDDEN_SIZE), jnp.float32, -bound1, bound1)
    b1 = jax.random.uniform(kb1, (HIDDEN_SIZE,), jnp.float32, -bound1, bound1)
    w2 = jax.random.uniform(kw2, (HIDDEN_SIZE, OUTPUT_SIZE), jnp.float32, -bound2, bound2)
    b2 = jax.random.uniform(kb2, (OUTPUT_SIZE,), jnp.float32, -bound2, bound2)

    x = jax.random.normal(kx, (BATCH, INPUT_SIZE), jnp.float32)

    # 1) f32 path (single tile).
    out = jax.block_until_ready(hunter_agent_forward(x, w1, b1, w2, b2))
    ref = reference_forward(x, w1, b1, w2, b2)
    assert out.shape == (BATCH, OUTPUT_SIZE), out.shape
    assert jnp.allclose(out, ref, atol=2e-5, rtol=2e-5), "f32 mismatch vs reference"
    assert jnp.allclose(jnp.sum(out, axis=1), 1.0, atol=1e-5), "softmax rows must sum to 1"

    # 2) bf16-streamed x (producer emits bf16 -> no extra cast pass in the wrapper).
    x_bf16 = x.astype(jnp.bfloat16)
    out_bf = jax.block_until_ready(hunter_agent_forward(x_bf16, w1, b1, w2, b2))
    ref_bf = reference_forward(x_bf16.astype(jnp.float32), w1, b1, w2, b2)
    assert jnp.allclose(out_bf, ref_bf, atol=3e-2), "bf16 mismatch vs reference"
    assert jnp.allclose(jnp.sum(out_bf, axis=1), 1.0, atol=1e-5)

    # 3) Multi-tile grid with a partial last tile (exercises edge masking, grid > 1).
    B3 = 300
    x3 = jax.random.normal(jax.random.PRNGKey(1), (B3, INPUT_SIZE), jnp.float32)
    out3 = jax.block_until_ready(hunter_agent_forward(x3, w1, b1, w2, b2, block_b=128))
    ref3 = reference_forward(x3, w1, b1, w2, b2)
    assert out3.shape == (B3, OUTPUT_SIZE)
    assert jnp.allclose(out3, ref3, atol=2e-5, rtol=2e-5), "multi-tile mismatch vs reference"

    print("KERNEL_OK")
</pallas_src>

<mosaic_0001>
module attributes {stable_mosaic.version = 11 : i64} {
  func.func @hunter_mlp_kernel(%arg0: i32, %arg1: memref<8x100xf32, #tpu.memory_space<vmem>>, %arg2: memref<100x128xf32, #tpu.memory_space<vmem>>, %arg3: memref<1x128xf32, #tpu.memory_space<vmem>>, %arg4: memref<1x128xf32, #tpu.memory_space<vmem>>, %arg5: memref<1x1xf32, #tpu.memory_space<smem>>, %arg6: memref<8x2xf32, #tpu.memory_space<vmem>>) attributes {dimension_semantics = [#tpu.dimension_semantics<parallel>], iteration_bounds = array<i64: 1>, scalar_prefetch = 0 : i64, scratch_operands = 0 : i64, tpu.core_type = #tpu.core_type<tc>, window_params = [{transform_indices = @transform_0, window_bounds = array<i64: 8, 100>}, {pipeline_mode = #tpu.pipeline_mode<synchronous>, transform_indices = @transform_1, window_bounds = array<i64: 100, 128>}, {pipeline_mode = #tpu.pipeline_mode<synchronous>, transform_indices = @transform_2, window_bounds = array<i64: 1, 128>}, {pipeline_mode = #tpu.pipeline_mode<synchronous>, transform_indices = @transform_3, window_bounds = array<i64: 1, 128>}, {transform_indices = @transform_4, window_bounds = array<i64: 1, 1>}, {transform_indices = @transform_5, window_bounds = array<i64: 8, 2>}]} {
    %c0 = arith.constant 0 : index
    %c0_0 = arith.constant 0 : index
    %0 = vector.load %arg1[%c0, %c0_0] : memref<8x100xf32, #tpu.memory_space<vmem>>, vector<8x100xf32>
    %c0_1 = arith.constant 0 : index
    %c0_2 = arith.constant 0 : index
    %1 = vector.load %arg2[%c0_1, %c0_2] : memref<100x128xf32, #tpu.memory_space<vmem>>, vector<100x128xf32>
    %cst = arith.constant dense<0.000000e+00> : vector<8x128xf32>
    %2 = tpu.matmul %0, %1, %cst {dimension_numbers = #tpu.dot_dimension_numbers<[1], [0], [0], [1], [0, 0, 1, 1], [], []>} : vector<8x100xf32>, vector<100x128xf32>, vector<8x128xf32> -> vector<8x128xf32>
    %c0_3 = arith.constant 0 : index
    %c0_4 = arith.constant 0 : index
    %3 = vector.load %arg3[%c0_3, %c0_4] : memref<1x128xf32, #tpu.memory_space<vmem>>, vector<1x128xf32>
    %4 = vector.broadcast %3 : vector<1x128xf32> to vector<8x128xf32>
    %5 = arith.addf %2, %4 : vector<8x128xf32>
    %cst_5 = arith.constant 0.000000e+00 : f32
    %6 = vector.broadcast %cst_5 : f32 to vector<8x128xf32>
    %7 = arith.maximumf %5, %6 : vector<8x128xf32>
    %c0_6 = arith.constant 0 : index
    %c0_7 = arith.constant 0 : index
    %8 = vector.load %arg4[%c0_6, %c0_7] : memref<1x128xf32, #tpu.memory_space<vmem>>, vector<1x128xf32>
    %9 = vector.broadcast %8 : vector<1x128xf32> to vector<8x128xf32>
    %10 = arith.mulf %7, %9 : vector<8x128xf32>
    %cst_8 = arith.constant dense<0.000000e+00> : vector<8xf32>
    %11 = vector.multi_reduction <add>, %10, %cst_8 [1] : vector<8x128xf32> to vector<8xf32>
    %12 = vector.shape_cast %11 : vector<8xf32> to vector<8x1xf32>
    %c0_9 = arith.constant 0 : index
    %c0_10 = arith.constant 0 : index
    %13 = memref.load %arg5[%c0_9, %c0_10] : memref<1x1xf32, #tpu.memory_space<smem>>
    %14 = vector.broadcast %13 : f32 to vector<8x1xf32>
    %15 = arith.addf %12, %14 : vector<8x1xf32>
    %cst_11 = arith.constant 5.000000e-01 : f32
    %16 = vector.broadcast %cst_11 : f32 to vector<8x1xf32>
    %17 = arith.mulf %16, %15 : vector<8x1xf32>
    %18 = math.tanh %17 : vector<8x1xf32>
    %cst_12 = arith.constant 1.000000e+00 : f32
    %19 = vector.broadcast %cst_12 : f32 to vector<8x1xf32>
    %20 = arith.addf %19, %18 : vector<8x1xf32>
    %cst_13 = arith.constant 5.000000e-01 : f32
    %21 = vector.broadcast %cst_13 : f32 to vector<8x1xf32>
    %22 = arith.mulf %21, %20 : vector<8x1xf32>
    %23 = tpu.iota {dimensions = array<i32: 1>} : vector<8x2xi32>
    %c0_i32 = arith.constant 0 : i32
    %24 = vector.broadcast %c0_i32 : i32 to vector<8x2xi32>
    %25 = arith.cmpi eq, %23, %24 : vector<8x2xi32>
    %cst_14 = arith.constant 1.000000e+00 : f32
    %26 = vector.broadcast %cst_14 : f32 to vector<8x1xf32>
    %27 = arith.subf %26, %22 : vector<8x1xf32>
    %28 = vector.shape_cast %22 : vector<8x1xf32> to vector<8x1xf32>
    %29 = vector.broadcast %28 : vector<8x1xf32> to vector<8x2xf32>
    %30 = vector.shape_cast %27 : vector<8x1xf32> to vector<8x1xf32>
    %31 = vector.broadcast %30 : vector<8x1xf32> to vector<8x2xf32>
    %32 = arith.select %25, %29, %31 : vector<8x2xi1>, vector<8x2xf32>
    %c0_15 = arith.constant 0 : index
    %c0_16 = arith.constant 0 : index
    %33 = vector.load %arg6[%c0_15, %c0_16] : memref<8x2xf32, #tpu.memory_space<vmem>>, vector<8x2xf32>
    tpu.vector_store %arg6[%c0_15, %c0_16], %32 {strides = array<i32>} : memref<8x2xf32, #tpu.memory_space<vmem>>, vector<8x2xf32>,
    return
  }
  func.func @transform_0(%arg0: i32) -> (i32, i32) {
    %c0_i32 = arith.constant 0 : i32
    %c0_i32_0 = arith.constant 0 : i32
    return %arg0, %c0_i32 : i32, i32
  }
  func.func @transform_1(%arg0: i32) -> (i32, i32) {
    %c0_i32 = arith.constant 0 : i32
    %c0_i32_0 = arith.constant 0 : i32
    %c0_i32_1 = arith.constant 0 : i32
    return %c0_i32, %c0_i32_0 : i32, i32
  }
  func.func @transform_2(%arg0: i32) -> (i32, i32) {
    %c0_i32 = arith.constant 0 : i32
    %c0_i32_0 = arith.constant 0 : i32
    %c0_i32_1 = arith.constant 0 : i32
    return %c0_i32, %c0_i32_0 : i32, i32
  }
  func.func @transform_3(%arg0: i32) -> (i32, i32) {
    %c0_i32 = arith.constant 0 : i32
    %c0_i32_0 = arith.constant 0 : i32
    %c0_i32_1 = arith.constant 0 : i32
    return %c0_i32, %c0_i32_0 : i32, i32
  }
  func.func @transform_4(%arg0: i32) -> (i32, i32) {
    %c0_i32 = arith.constant 0 : i32
    %c0_i32_0 = arith.constant 0 : i32
    %c0_i32_1 = arith.constant 0 : i32
    return %c0_i32, %c0_i32_0 : i32, i32
  }
  func.func @transform_5(%arg0: i32) -> (i32, i32) {
    %c0_i32 = arith.constant 0 : i32
    %c0_i32_0 = arith.constant 0 : i32
    return %arg0, %c0_i32 : i32, i32
  }
}

</mosaic_0001>

<llo_original>
// kernel: tpu_custom_call.1
$region0: #{tpu_custom_call.1}
  #allocation0 [shape = 'u32[]', space=smem, size = 0x4, offset = 0x4, fixed_abs, tag = 'smem constant byte address 0x4 - core index']
  #allocation1 [shape = 'u32[144,128]{1,0:T(1,128)}', space=vmem, size = 0x12000, scoped, tag = 'internal scratch']
  #allocation2 [shape = 'f32[1,1]{1,0:T(1,128)S(6)}', space=smem, size = 0x200, scoped, tag = 'scoped memory for tpu_custom_call.1']
  %s0 = inlined_call_operand.hbm [shape: f32[8,100], index: 0, kind: input, shape index: {}]
  %s1 = inlined_call_operand.hbm [shape: f32[100,128], index: 1, kind: input, shape index: {}]
  %s2 = inlined_call_operand.vmem [shape: f32[1,128], index: 2, kind: input, shape index: {}]
  %s3 = inlined_call_operand.vmem [shape: f32[1,128], index: 3, kind: input, shape index: {}]
  %s4 = inlined_call_operand.<no memory space> [shape: f32[1,1], index: 4, kind: input, shape index: {}]
  %s5 = inlined_call_operand.vmem [shape: f32[8,2], index: 5, kind: output, shape index: {}]
  %s6 = sld [smem:[#allocation0]]
  $region38: #{tpu_custom_call.1} parent=0
    _
  %s8 = ssub.s32 1, %s6
  %s9 = scalar_select 0, %s8, %s6
  %10 = sst [smem:[#allocation2]] %s4
  $region1: #{tpu_custom_call.1} parent=0
    #allocation3 [shape = 'u8[4096]{0}', space=vmem, size = 0x1000, scoped, tag = 'input window, operand 0, single buffered']
    #allocation4 [shape = 's32[1]{0}', space=sflag, size = 0x4, scoped, tag = 'scoped memory for tpu_custom_call.1']
    #allocation5 [shape = 'u8[53248]{0}', space=vmem, size = 0xd000, scoped, tag = 'input window, operand 1, single buffered']
    #allocation6 [shape = 's32[1]{0}', space=sflag, size = 0x4, scoped, tag = 'scoped memory for tpu_custom_call.1']
    %11 = vsyncpa [#allocation4], 0
    %12 = vsyncpa [#allocation6], 0
    // Predicated region
    $region2: #{tpu_custom_call.1} parent=1 // pred_check
      _
    $region3: #{tpu_custom_call.1} parent=1 // pred_check_branch
      %14 = sbr.rel (0) target = $region5
    $region4: #{tpu_custom_call.1} parent=1 // pred_region
      %s16 = ssub.s32 128, 128
      %17 = vsyncadd [#allocation4], %s16
      %s19 = sshll.u32 [#allocation3], 4
      %s20 = int_to_ptr.vmem [resolvable:$true] %s19
      %22 = dma.hbm_to_vmem [thread:$0]  %s0, 128, %s20, [#allocation4]
    $region5: #{tpu_custom_call.1} parent=1 // pred_fallthru
      _
    // Predicated region
    $region6: #{tpu_custom_call.1} parent=1 // pred_check
      _
    $region7: #{tpu_custom_call.1} parent=1 // pred_check_branch
      %24 = sbr.rel (0) target = $region9
    $region8: #{tpu_custom_call.1} parent=1 // pred_region
      %s26 = ssub.s32 1664, 1664
      %27 = vsyncadd [#allocation6], %s26
      %s28 = sshll.u32 [#allocation5], 4
      %s29 = int_to_ptr.vmem [resolvable:$true] %s28
      %34 = dma.hbm_to_vmem [thread:$0]  %s1, 1664, %s29, [#allocation6], 128, 128, 8
    $region9: #{tpu_custom_call.1} parent=1 // pred_fallthru
      _
    // Predicated region
    $region10: #{tpu_custom_call.1} parent=1 // pred_check
      _
    $region11: #{tpu_custom_call.1} parent=1 // pred_check_branch
      %36 = sbr.rel (0) target = $region13
    $region12: #{tpu_custom_call.1} parent=1 // pred_region
      _
    $region13: #{tpu_custom_call.1} parent=1 // pred_fallthru
      _
    // Predicated region
    $region14: #{tpu_custom_call.1} parent=1 // pred_check
      _
    $region15: #{tpu_custom_call.1} parent=1 // pred_check_branch
      %38 = sbr.rel (0) target = $region17
    $region16: #{tpu_custom_call.1} parent=1 // pred_region
      _
    $region17: #{tpu_custom_call.1} parent=1 // pred_fallthru
      _
    // Predicated region
    $region18: #{tpu_custom_call.1} parent=1 // pred_check
      _
    $region19: #{tpu_custom_call.1} parent=1 // pred_check_branch
      %40 = sbr.rel (0) target = $region21
    $region20: #{tpu_custom_call.1} parent=1 // pred_region
      _
    $region21: #{tpu_custom_call.1} parent=1 // pred_fallthru
      _
    // Predicated region
    $region22: #{tpu_custom_call.1} parent=1 // pred_check
      _
    $region23: #{tpu_custom_call.1} parent=1 // pred_check_branch
      %42 = sbr.rel (0) target = $region25
    $region24: #{tpu_custom_call.1} parent=1 // pred_region
      %43 = dma.done [#allocation4], 128
    $region25: #{tpu_custom_call.1} parent=1 // pred_fallthru
      _
    // Predicated region
    $region26: #{tpu_custom_call.1} parent=1 // pred_check
      _
    $region27: #{tpu_custom_call.1} parent=1 // pred_check_branch
      %45 = sbr.rel (0) target = $region29
    $region28: #{tpu_custom_call.1} parent=1 // pred_region
      %46 = dma.done [#allocation6], 1664
    $region29: #{tpu_custom_call.1} parent=1 // pred_fallthru
      _
    %v47 = vld [vmem:[#allocation3] sm:$0xff]
    %v48 = vld [vmem:[#allocation5] sm:$0xff]
    %v49 = vld [vmem:[#allocation5 + $0x8] sm:$0xff]
    %v50 = vld [vmem:[#allocation5 + $0x10] sm:$0xff]
    %v51 = vld [vmem:[#allocation5 + $0x18] sm:$0xff]
    %v52 = vld [vmem:[#allocation5 + $0x20] sm:$0xff]
    %v53 = vld [vmem:[#allocation5 + $0x28] sm:$0xff]
    %v54 = vld [vmem:[#allocation5 + $0x30] sm:$0xff]
    %v55 = vld [vmem:[#allocation5 + $0x38] sm:$0xff]
    %v56 = vld [vmem:[#allocation5 + $0x40] sm:$0xff]
    %v57 = vld [vmem:[#allocation5 + $0x48] sm:$0xff]
    %v58 = vld [vmem:[#allocation5 + $0x50] sm:$0xff]
    %v59 = vld [vmem:[#allocation5 + $0x58] sm:$0xff]
    %v60 = vld [vmem:[#allocation5 + $0x60] sm:$0xf]
    %v61 = vld [vmem:[%s2] sm:$0x1]
    %v63 = vlaneseq
    %v64 = vshrl.u32 %v63, 7
    %v65 = vsub.s32 0, %v64
    %v66 = vrot.slane %v61, %v65
    %vm68 = vcmask 818176
    %v70 = vsel %vm68, %v47, 0
    %vm72 = vcmask 1043456
    %v74 = vsel %vm72, %v60, 0
    %76 = vmatprep.subr.mxu0 0.0
    %77 = vmatpush1.msra.mxu0 0.0
    %78 = vmatprep.subr.mxu0 0.0
    %79 = vmatpush1.msra.mxu0 0.0
    %80 = vmatprep.subr.mxu0 0.0
    %81 = vmatpush1.msra.mxu0 0.0
    %82 = vmatprep.subr.mxu0 0.0
    %83 = vmatpush1.msra.mxu0 %v74
    %84 = vmatprep.subr.mxu0 0.0
    %85 = vmatpush1.msra.mxu0 %v59
    %86 = vmatprep.subr.mxu0 0.0
    %87 = vmatpush1.msra.mxu0 %v58
    %88 = vmatprep.subr.mxu0 0.0
    %89 = vmatpush1.msra.mxu0 %v57
    %90 = vmatprep.subr.mxu0 0.0
    %91 = vmatpush1.msra.mxu0 %v56
    %92 = vmatprep.subr.mxu0 0.0
    %93 = vmatpush1.msra.mxu0 %v55
    %94 = vmatprep.subr.mxu0 0.0
    %95 = vmatpush1.msra.mxu0 %v54
    %96 = vmatprep.subr.mxu0 0.0
    %97 = vmatpush1.msra.mxu0 %v53
    %98 = vmatprep.subr.mxu0 0.0
    %99 = vmatpush1.msra.mxu0 %v52
    %100 = vmatprep.subr.mxu0 0.0
    %101 = vmatpush1.msra.mxu0 %v51
    %102 = vmatprep.subr.mxu0 0.0
    %103 = vmatpush1.msra.mxu0 %v50
    %104 = vmatprep.subr.mxu0 0.0
    %105 = vmatpush1.msra.mxu0 %v49
    %106 = vmatprep.subr.mxu0 0.0
    %107 = vmatpush1.msra.mxu0 %v48
    %108 = vmatprep.subr.mxu0 0.0
    %109 = vmatpush2.msra.mxu0 0.0
    %110 = vmatprep.subr.mxu0 0.0
    %111 = vmatpush2.msra.mxu0 0.0
    %112 = vmatprep.subr.mxu0 0.0
    %113 = vmatpush2.msra.mxu0 0.0
    %114 = vmatprep.subr.mxu0 0.0
    %115 = vmatpush2.msra.mxu0 0.0
    %116 = vmatprep.subr.mxu0 0.0
    %117 = vmatpush2.msra.mxu0 0.0
    %118 = vmatprep.subr.mxu0 0.0
    %119 = vmatpush2.msra.mxu0 0.0
    %120 = vmatprep.subr.mxu0 0.0
    %121 = vmatpush2.msra.mxu0 0.0
    %122 = vmatprep.subr.mxu0 0.0
    %123 = vmatpush2.msra.mxu0 0.0
    %124 = vmatprep.subr.mxu0 0.0
    %125 = vmatpush2.msra.mxu0 0.0
    %126 = vmatprep.subr.mxu0 0.0
    %127 = vmatpush2.msra.mxu0 0.0
    %128 = vmatprep.subr.mxu0 0.0
    %129 = vmatpush2.msra.mxu0 0.0
    %130 = vmatprep.subr.mxu0 0.0
    %131 = vmatpush2.msra.mxu0 0.0
    %132 = vmatprep.subr.mxu0 0.0
    %133 = vmatpush2.msra.mxu0 0.0
    %134 = vmatprep.subr.mxu0 0.0
    %135 = vmatpush2.msra.mxu0 0.0
    %136 = vmatprep.subr.mxu0 0.0
    %137 = vmatpush2.msra.mxu0 0.0
    %138 = vmatprep.subr.mxu0 0.0
    %139 = vmatpush2.msra.mxu0 0.0
    %140 = vmatprep.mubr.f32.mxu0 0.0
    %141 = vmatmul.mubr.f32.gmra.mxu0 %v70
    %v142 = vpop.f32.mrf.mxu0
    %v143 = vadd.f32 %v66, %v142
    %v144 = vpop.f32.mrf.mxu0
    %145 = vdwg.mxu0
    %v146 = vmax.f32 %v143, 0.0
    %v147 = vld [vmem:[%s3] sm:$0x1]
    %v149 = vlaneseq
    %v150 = vshrl.u32 %v149, 7
    %v151 = vsub.s32 0, %v150
    %v152 = vrot.slane %v147, %v151
    %v154 = vmul.f32 %v146, %v152
    %155 = vadd.xlane.f32.xlu0 %v154
    %v156 = vpop.xlane.xlu0 %155
    %s157 = sld [smem:[#allocation2]]
    %v158 = vstv %s157
    %v159 = vadd.f32 %v156, %v158
    %v160 = vmul.f32 %v159, 0.5
    %v161 = vtanh.pop %v160
    %v162 = vadd.f32 %v161, 1.0
    %v163 = vmul.f32 %v162, 0.5
    %v164 = vlaneseq
    %v165 = vand.u32 %v164, 127
    %vm166 = vcmp.eq.s32.totalorder %v165, 0
    %v167 = vsub.f32 1.0, %v163
    %v168 = vsel %vm166, %v163, %v167
    %vm169 = vcmask 15360
    %170 = vst.msk [vmem:[%s5] sm:$0xff] %vm169, %v168
    // Predicated region
    $region30: #{tpu_custom_call.1} parent=1 // pred_check
      _
    $region31: #{tpu_custom_call.1} parent=1 // pred_check_branch
      %172 = sbr.rel (0) target = $region33
    $region32: #{tpu_custom_call.1} parent=1 // pred_region
      _
    $region33: #{tpu_custom_call.1} parent=1 // pred_fallthru
      _
    // Predicated region
    $region34: #{tpu_custom_call.1} parent=1 // pred_check
      _
    $region35: #{tpu_custom_call.1} parent=1 // pred_check_branch
      %174 = sbr.rel (0) target = $region37
    $region36: #{tpu_custom_call.1} parent=1 // pred_region
      _
    $region37: #{tpu_custom_call.1} parent=1 // pred_fallthru
      _
    %175 = vsyncpa [#allocation4], 1
    %176 = vsyncpa [#allocation6], 1

</llo_original>
